<compile_context>
chip_gen: v7x
topology: tpu7x:2x2x1
jax: 0.10.0
libtpu: 0.0.40
codegen_flags: <defaults>
</compile_context>

<pallas_src>
import functools

import jax
import jax.numpy as jnp
from jax.experimental import pallas as pl
from jax.experimental.pallas import tpu as pltpu


def _round_up(x, m):
    return (x + m - 1) // m * m


def _make_discriminator_kernel(n_layers, input_dim, output_dim, pad_out,
                               non_linear, is_wasserstein):
    """Kernel refs: (x, packed_weights, packed_biases, out)."""

    def kernel(x_ref, w_ref, b_ref, o_ref):
        # x_ref: (TILE_M, input_dim) f32
        # w_ref: (L, PAD, PAD) bf16, each layer's (in_i, out_i) weight zero-padded
        # b_ref: (L, 1, PAD)  f32, zero-padded biases
        # o_ref: (TILE_M, PAD_OUT) f32, lane-dense padded output block
        h = x_ref[...]
        for i in range(n_layers):
            if i == 0:
                # only the first `input_dim` rows of layer-0 weights are real
                w = w_ref[0, :input_dim, :]            # (input_dim, PAD) bf16, static slice
            else:
                # activations are already PAD-wide (padded lanes are exactly 0)
                w = w_ref[i]                            # (PAD, PAD) bf16
            b = b_ref[i]                                # (1, PAD) f32
            h = jnp.dot(h.astype(jnp.bfloat16), w,
                        preferred_element_type=jnp.float32) + b
            # F.dropout(..., training=False) -> identity
            if i < n_layers - 1 and non_linear:
                h = jnp.maximum(h, 0.0)                 # ReLU (VPU)

        # h: (TILE_M, PAD) f32; real logits live in the first `output_dim` lanes.
        logits = h[:, :pad_out]                         # static slice, lane-dense block
        if is_wasserstein:
            o_ref[...] = logits
        elif output_dim > 1:
            # lane-full masked softmax (padded lanes -> 0 probability), stable.
            lane = jax.lax.broadcasted_iota(jnp.int32, logits.shape, 1)
            masked = jnp.where(lane < output_dim, logits, jnp.float32(-1e30))
            m = jnp.max(masked, axis=-1, keepdims=True)
            e = jnp.exp(masked - m)
            s = jnp.sum(e, axis=-1, keepdims=True)
            o_ref[...] = e / s                          # exact normalization
        else:
            # sigmoid via EUP tanh; padded lanes get 0.5 and are sliced away.
            o_ref[...] = 0.5 * (jnp.tanh(0.5 * logits) + 1.0)

    return kernel


def pack_discriminator_params(weights, biases):
    """Pack per-layer params into one bf16 weight slab + one f32 bias slab.

    Call this ONCE at parameter-creation time; reuse the result for every forward.
    """
    layer_sizes = tuple([weights[0].shape[0]] + [w.shape[1] for w in weights])
    pad = _round_up(max(layer_sizes), 128)              # lane/sublane friendly
    wp = jnp.stack([
        jnp.pad(w.astype(jnp.bfloat16),
                ((0, pad - w.shape[0]), (0, pad - w.shape[1])))
        for w in weights
    ])                                                  # (L, PAD, PAD) bf16
    bp = jnp.stack([
        jnp.pad(jnp.reshape(b, (1, -1)).astype(jnp.float32),
                ((0, 0), (0, pad - b.size)))
        for b in biases
    ])                                                  # (L, 1, PAD) f32
    return wp, bp, layer_sizes


@functools.partial(
    jax.jit,
    static_argnames=("layer_sizes", "non_linear", "is_wasserstein", "tile_m"),
)
def discriminator_forward_packed(x, wp, bp, *, layer_sizes, non_linear,
                                 is_wasserstein, tile_m=256):
    """Batch-tiled Pallas forward using pre-packed parameter slabs."""
    n_layers = len(layer_sizes) - 1
    input_dim = layer_sizes[0]
    output_dim = layer_sizes[-1]
    pad = wp.shape[-1]
    pad_out = _round_up(output_dim, 128)                # lane-dense output block
    batch = x.shape[0]

    # --- batch tile selection ------------------------------------------------
    # Big tiles amortize the ~0.35 us/grid-step pipeline overhead and feed a
    # taller M into the 256-wide MXU (v6e/v7x); keep >= 2 grid steps whenever
    # the batch allows so the "parallel" axis has work for both v7x cores.
    b_min = _round_up(batch, 8)                         # f32 sublane multiple
    tile = max(8, min(_round_up(tile_m, 8), b_min))
    if b_min > tile and (b_min + tile - 1) // tile < 2:
        tile = _round_up((b_min + 1) // 2, 8)
    if b_min >= 2 * tile_m and b_min == tile:           # whole-batch tile but room for 2 steps
        tile = _round_up((b_min + 1) // 2, 8)
    b_pad = _round_up(b_min, tile)
    if b_pad != batch:
        x = jnp.pad(x, ((0, b_pad - batch), (0, 0)))
    grid = (b_pad // tile,)

    # --- VMEM budget ---------------------------------------------------------
    # Resident slabs are single-buffered (Buffered(1)); activation/output tiles
    # are double-buffered by the pipeline.
    vmem_needed = (
        wp.size * 2                                     # bf16 weight slab
        + bp.size * 4                                   # f32 bias slab
        + 2 * tile * input_dim * 4                      # x tile, double-buffered
        + 2 * tile * pad_out * 4                        # out tile, double-buffered
    )
    if vmem_needed > 48 * 2 ** 20:
        # TODO(synk): for very wide discriminators, tile the layer/K dimension
        # into an "arbitrary" grid axis instead of one resident slab.
        raise ValueError(
            f"packed weight slab ({vmem_needed} B) exceeds the resident-VMEM "
            "budget for this kernel design")
    vmem_limit = int(min(64 * 2 ** 20, max(2 * vmem_needed, 16 * 2 ** 20)))

    kernel = _make_discriminator_kernel(
        n_layers, input_dim, output_dim, pad_out, non_linear, is_wasserstein)

    flops = 2 * b_pad * sum(a * b for a, b in zip(layer_sizes[:-1], layer_sizes[1:]))
    transcendentals = 0 if is_wasserstein else b_pad * pad_out
    bytes_accessed = (
        b_pad * input_dim * 4
        + wp.size * 2
        + bp.size * 4
        + b_pad * pad_out * 4
    )

    out = pl.pallas_call(
        kernel,
        out_shape=jax.ShapeDtypeStruct((b_pad, pad_out), jnp.float32),
        grid=grid,
        in_specs=[
            # activations: tiled along batch, double-buffered by the pipeline
            pl.BlockSpec((tile, input_dim), lambda i: (i, 0)),
            # packed weights/biases: constant block index -> fetched once,
            # single-buffered (no wasted second pipeline buffer)
            pl.BlockSpec((n_layers, pad, pad), lambda i: (0, 0, 0),
                         pipeline_mode=pl.Buffered(1)),
            pl.BlockSpec((n_layers, 1, pad), lambda i: (0, 0, 0),
                         pipeline_mode=pl.Buffered(1)),
        ],
        # lane-dense (tile, 128k) output block -> unmasked vector stores
        out_specs=pl.BlockSpec((tile, pad_out), lambda i: (i, 0)),
        compiler_params=pltpu.CompilerParams(
            dimension_semantics=("parallel",),          # megacore sharding on v7x
            vmem_limit_bytes=vmem_limit,
        ),
        cost_estimate=pl.CostEstimate(
            flops=int(flops),
            transcendentals=int(transcendentals),
            bytes_accessed=int(bytes_accessed),
        ),
    )(x, wp, bp)
    return out[:batch, :output_dim]


def _init_params(key, layer_sizes, bias=True):
    """PyTorch-style uniform(-1/sqrt(fan_in), 1/sqrt(fan_in)) init."""
    weights, biases = [], []
    for d_in, d_out in zip(layer_sizes[:-1], layer_sizes[1:]):
        key, kw, kb = jax.random.split(key, 3)
        bound = 1.0 / jnp.sqrt(jnp.float32(d_in))
        # stored as (in, out) so the kernel computes x @ W (== x @ W_torch.T)
        w = jax.random.uniform(kw, (d_in, d_out), jnp.float32, -bound, bound)
        if bias:
            b = jax.random.uniform(kb, (1, d_out), jnp.float32, -bound, bound)
        else:
            b = jnp.zeros((1, d_out), jnp.float32)
        weights.append(w)
        biases.append(b)
    return weights, biases


def _reference_forward(x, weights, biases, non_linear, is_wasserstein):
    """Plain-JAX f32 reference (mirrors the PyTorch forward in eval mode)."""
    h = x
    n_layers = len(weights)
    output_dim = weights[-1].shape[1]
    for i in range(n_layers):
        h = h @ weights[i] + biases[i]
        if i < n_layers - 1:
            if non_linear:
                h = jnp.maximum(h, 0.0)
        elif not is_wasserstein:
            if output_dim > 1:
                h = jax.nn.softmax(h, axis=-1)
            else:
                h = jax.nn.sigmoid(h)
    return h


if __name__ == "__main__":
    # Module config: input_dim=32, hidden_layer_dim=[64, 32], output_dim=8,
    # non_linear=True, bias=True, dropout_threshold=0.1 (identity in eval),
    # is_wasserstein=False -> softmax output.
    input_dim = 32
    hidden_layer_dim = [64, 32]
    output_dim = 8
    non_linear = True
    is_wasserstein = False
    batch = 512          # exercises the batch grid: 2 tiles of 256 (megacore-friendly)
    tile_m = 256

    layer_sizes = [input_dim] + hidden_layer_dim + [output_dim]

    key = jax.random.PRNGKey(0)
    key, xkey = jax.random.split(key)
    x = jax.random.normal(xkey, (batch, input_dim), jnp.float32)
    weights, biases = _init_params(key, layer_sizes, bias=True)

    # Pack parameters ONCE (outside the hot path) and reuse for every forward.
    wp, bp, packed_layer_sizes = pack_discriminator_params(weights, biases)

    out = discriminator_forward_packed(
        x, wp, bp,
        layer_sizes=packed_layer_sizes,
        non_linear=non_linear,
        is_wasserstein=is_wasserstein,
        tile_m=tile_m,
    )
    out = jax.block_until_ready(out)

    # correctness check vs. pure-JAX f32 reference (kernel uses bf16 weights,
    # so tolerances are loosened accordingly)
    ref = _reference_forward(x, weights, biases, non_linear, is_wasserstein)
    assert out.shape == (batch, output_dim)
    assert bool(jnp.all(jnp.isfinite(out)))
    assert jnp.allclose(out, ref, atol=5e-2, rtol=5e-2), "mismatch vs reference"
    # softmax rows sum to ~1 (exact divide in-kernel)
    assert jnp.allclose(jnp.sum(out, axis=-1), 1.0, atol=1e-3)

    print("KERNEL_OK")
</pallas_src>

<mosaic_0001>
module attributes {stable_mosaic.version = 11 : i64} {
  func.func @kernel(%arg0: i32, %arg1: memref<256x32xf32, #tpu.memory_space<vmem>>, %arg2: memref<3x128x128xbf16, #tpu.memory_space<vmem>>, %arg3: memref<3x1x128xf32, #tpu.memory_space<vmem>>, %arg4: memref<256x128xf32, #tpu.memory_space<vmem>>) attributes {dimension_semantics = [#tpu.dimension_semantics<parallel>], iteration_bounds = array<i64: 2>, scalar_prefetch = 0 : i64, scratch_operands = 0 : i64, tpu.core_type = #tpu.core_type<tc>, window_params = [{transform_indices = @transform_0, window_bounds = array<i64: 256, 32>}, {pipeline_mode = #tpu.pipeline_mode<synchronous>, transform_indices = @transform_1, window_bounds = array<i64: 3, 128, 128>}, {pipeline_mode = #tpu.pipeline_mode<synchronous>, transform_indices = @transform_2, window_bounds = array<i64: 3, 1, 128>}, {transform_indices = @transform_3, window_bounds = array<i64: 256, 128>}]} {
    %c0 = arith.constant 0 : index
    %c0_0 = arith.constant 0 : index
    %0 = vector.load %arg1[%c0, %c0_0] : memref<256x32xf32, #tpu.memory_space<vmem>>, vector<256x32xf32>
    %c0_1 = arith.constant 0 : index
    %c0_2 = arith.constant 0 : index
    %c0_3 = arith.constant 0 : index
    %1 = vector.load %arg2[%c0_1, %c0_2, %c0_3] : memref<3x128x128xbf16, #tpu.memory_space<vmem>>, vector<1x32x128xbf16>
    %2 = vector.shape_cast %1 : vector<1x32x128xbf16> to vector<32x128xbf16>
    %c0_4 = arith.constant 0 : index
    %c0_5 = arith.constant 0 : index
    %c0_6 = arith.constant 0 : index
    %3 = vector.load %arg3[%c0_4, %c0_5, %c0_6] : memref<3x1x128xf32, #tpu.memory_space<vmem>>, vector<1x1x128xf32>
    %4 = vector.shape_cast %3 : vector<1x1x128xf32> to vector<1x128xf32>
    %5 = arith.truncf %0 : vector<256x32xf32> to vector<256x32xbf16>
    %cst = arith.constant dense<0.000000e+00> : vector<256x128xf32>
    %6 = tpu.matmul %5, %2, %cst {dimension_numbers = #tpu.dot_dimension_numbers<[1], [0], [0], [1], [0, 0, 1, 1], [], []>} : vector<256x32xbf16>, vector<32x128xbf16>, vector<256x128xf32> -> vector<256x128xf32>
    %7 = vector.broadcast %4 : vector<1x128xf32> to vector<256x128xf32>
    %8 = arith.addf %6, %7 : vector<256x128xf32>
    %cst_7 = arith.constant 0.000000e+00 : f32
    %9 = vector.broadcast %cst_7 : f32 to vector<256x128xf32>
    %10 = arith.maximumf %8, %9 : vector<256x128xf32>
    %c1 = arith.constant 1 : index
    %c0_8 = arith.constant 0 : index
    %c0_9 = arith.constant 0 : index
    %11 = vector.load %arg2[%c1, %c0_8, %c0_9] : memref<3x128x128xbf16, #tpu.memory_space<vmem>>, vector<1x128x128xbf16>
    %12 = vector.shape_cast %11 : vector<1x128x128xbf16> to vector<128x128xbf16>
    %c1_10 = arith.constant 1 : index
    %c0_11 = arith.constant 0 : index
    %c0_12 = arith.constant 0 : index
    %13 = vector.load %arg3[%c1_10, %c0_11, %c0_12] : memref<3x1x128xf32, #tpu.memory_space<vmem>>, vector<1x1x128xf32>
    %14 = vector.shape_cast %13 : vector<1x1x128xf32> to vector<1x128xf32>
    %15 = arith.truncf %10 : vector<256x128xf32> to vector<256x128xbf16>
    %cst_13 = arith.constant dense<0.000000e+00> : vector<256x128xf32>
    %16 = tpu.matmul %15, %12, %cst_13 {dimension_numbers = #tpu.dot_dimension_numbers<[1], [0], [0], [1], [0, 0, 1, 1], [], []>} : vector<256x128xbf16>, vector<128x128xbf16>, vector<256x128xf32> -> vector<256x128xf32>
    %17 = vector.broadcast %14 : vector<1x128xf32> to vector<256x128xf32>
    %18 = arith.addf %16, %17 : vector<256x128xf32>
    %cst_14 = arith.constant 0.000000e+00 : f32
    %19 = vector.broadcast %cst_14 : f32 to vector<256x128xf32>
    %20 = arith.maximumf %18, %19 : vector<256x128xf32>
    %c2 = arith.constant 2 : index
    %c0_15 = arith.constant 0 : index
    %c0_16 = arith.constant 0 : index
    %21 = vector.load %arg2[%c2, %c0_15, %c0_16] : memref<3x128x128xbf16, #tpu.memory_space<vmem>>, vector<1x128x128xbf16>
    %22 = vector.shape_cast %21 : vector<1x128x128xbf16> to vector<128x128xbf16>
    %c2_17 = arith.constant 2 : index
    %c0_18 = arith.constant 0 : index
    %c0_19 = arith.constant 0 : index
    %23 = vector.load %arg3[%c2_17, %c0_18, %c0_19] : memref<3x1x128xf32, #tpu.memory_space<vmem>>, vector<1x1x128xf32>
    %24 = vector.shape_cast %23 : vector<1x1x128xf32> to vector<1x128xf32>
    %25 = arith.truncf %20 : vector<256x128xf32> to vector<256x128xbf16>
    %cst_20 = arith.constant dense<0.000000e+00> : vector<256x128xf32>
    %26 = tpu.matmul %25, %22, %cst_20 {dimension_numbers = #tpu.dot_dimension_numbers<[1], [0], [0], [1], [0, 0, 1, 1], [], []>} : vector<256x128xbf16>, vector<128x128xbf16>, vector<256x128xf32> -> vector<256x128xf32>
    %27 = vector.broadcast %24 : vector<1x128xf32> to vector<256x128xf32>
    %28 = arith.addf %26, %27 : vector<256x128xf32>
    %29 = tpu.iota {dimensions = array<i32: 1>} : vector<256x128xi32>
    %c8_i32 = arith.constant 8 : i32
    %30 = vector.broadcast %c8_i32 : i32 to vector<256x128xi32>
    %31 = arith.cmpi slt, %29, %30 : vector<256x128xi32>
    %cst_21 = arith.constant -1.000000e+30 : f32
    %32 = vector.broadcast %cst_21 : f32 to vector<256x128xf32>
    %33 = arith.select %31, %28, %32 : vector<256x128xi1>, vector<256x128xf32>
    %cst_22 = arith.constant dense<0xFF800000> : vector<256xf32>
    %34 = vector.multi_reduction <maximumf>, %33, %cst_22 [1] : vector<256x128xf32> to vector<256xf32>
    %35 = vector.shape_cast %34 : vector<256xf32> to vector<256x1xf32>
    %36 = vector.broadcast %35 : vector<256x1xf32> to vector<256x128xf32>
    %37 = arith.subf %33, %36 : vector<256x128xf32>
    %38 = math.exp %37 : vector<256x128xf32>
    %cst_23 = arith.constant dense<0.000000e+00> : vector<256xf32>
    %39 = vector.multi_reduction <add>, %38, %cst_23 [1] : vector<256x128xf32> to vector<256xf32>
    %40 = vector.shape_cast %39 : vector<256xf32> to vector<256x1xf32>
    %41 = vector.broadcast %40 : vector<256x1xf32> to vector<256x128xf32>
    %42 = arith.divf %38, %41 : vector<256x128xf32>
    %c0_24 = arith.constant 0 : index
    %c0_25 = arith.constant 0 : index
    %43 = vector.load %arg4[%c0_24, %c0_25] : memref<256x128xf32, #tpu.memory_space<vmem>>, vector<256x128xf32>
    tpu.vector_store %arg4[%c0_24, %c0_25], %42 {strides = array<i32>} : memref<256x128xf32, #tpu.memory_space<vmem>>, vector<256x128xf32>,
    return
  }
  func.func @transform_0(%arg0: i32) -> (i32, i32) {
    %c0_i32 = arith.constant 0 : i32
    %c0_i32_0 = arith.constant 0 : i32
    return %arg0, %c0_i32 : i32, i32
  }
  func.func @transform_1(%arg0: i32) -> (i32, i32, i32) {
    %c0_i32 = arith.constant 0 : i32
    %c0_i32_0 = arith.constant 0 : i32
    %c0_i32_1 = arith.constant 0 : i32
    %c0_i32_2 = arith.constant 0 : i32
    return %c0_i32, %c0_i32_0, %c0_i32_1 : i32, i32, i32
  }
  func.func @transform_2(%arg0: i32) -> (i32, i32, i32) {
    %c0_i32 = arith.constant 0 : i32
    %c0_i32_0 = arith.constant 0 : i32
    %c0_i32_1 = arith.constant 0 : i32
    %c0_i32_2 = arith.constant 0 : i32
    return %c0_i32, %c0_i32_0, %c0_i32_1 : i32, i32, i32
  }
  func.func @transform_3(%arg0: i32) -> (i32, i32) {
    %c0_i32 = arith.constant 0 : i32
    %c0_i32_0 = arith.constant 0 : i32
    return %arg0, %c0_i32 : i32, i32
  }
}

</mosaic_0001>

<llo_original>
// kernel: discriminator_forward_packed.1
$region0: #{discriminator_forward_packed.1}
  #allocation0 [shape = 'u32[]', space=smem, size = 0x4, offset = 0x4, fixed_abs, tag = 'smem constant byte address 0x4 - core index']
  #allocation1 [shape = 'u32[144,128]{1,0:T(1,128)}', space=vmem, size = 0x12000, scoped, tag = 'internal scratch']
  %s0 = inlined_call_operand.vmem [shape: f32[512,32], index: 0, kind: input, shape index: {}]
  %s1 = inlined_call_operand.vmem [shape: bf16[3,128,128], index: 1, kind: input, shape index: {}]
  %s2 = inlined_call_operand.vmem [shape: f32[3,1,128], index: 2, kind: input, shape index: {}]
  %s3 = inlined_call_operand.vmem [shape: f32[512,128], index: 3, kind: output, shape index: {}]
  %s4 = sld [smem:[#allocation0]]
  $region45: #{discriminator_forward_packed.1} parent=0
    _
  %s6 = ssub.s32 1, %s4
  %s7 = scalar_select 0, %s6, %s4
  loop: start=0, step=1, limit=4
  $region2: #{discriminator_forward_packed.1} parent=0 // loop_pre_header
    _
  $region3: #{discriminator_forward_packed.1} parent=0 // loop_header
    %s9 = sphi 0, %s13
    %p10 = scmp.ge.s32.totalorder %s9, 4
    %s19 = sphi 0, %s21
    %s22 = sphi 0, %s19
    %s23 = sphi 0, %s22
    %s39 = sphi 0, %s23
    %s43 = sphi 0, %s43
    %s45 = sphi 0, %s43
    %s46 = sphi 0, %s45
    %s60 = sphi 0, %s46
    %s64 = sphi 0, %s64
    %s66 = sphi 0, %s64
    %s67 = sphi 0, %s66
    %s81 = sphi 0, %s67
    %s87 = sphi 0, %s89
    %s90 = sphi 0, %s87
    %s91 = sphi 0, %s90
    %s107 = sphi 0, %s91
  $region4: #{discriminator_forward_packed.1} parent=0 // loop_header_branch
    %12 = sbr.rel (%p10) target = $region8
  $region5: #{discriminator_forward_packed.1} parent=0 // loop_body
    %s14 = ssub.s32 %s9, 1
    %s15 = ssub.s32 %s9, 2
    %s16 = sadd.s32 %s9, 1
    %s17 = ssub.s32 %s9, %s16
    %p18 = scmp.eq.s32.totalorder %s17, 0
    %s20 = sadd.s32 %s19, 1
    %s21 = scalar_select %p18, %s19, %s20
    %p24 = pneg %p18
    %p25 = scmp.eq.s32.totalorder %s9, 1
    %p26 = por %p24, %p25
    %p27 = scmp.ne.s32.totalorder %s19, %s22
    %p28 = scmp.eq.s32.totalorder %s9, 0
    %p29 = por %p27, %p28
    %p30 = scmp.ne.s32.totalorder %s19, %s22
    %p31 = scmp.eq.s32.totalorder %s14, 1
    %p32 = por %p30, %p31
    %p33 = scmp.ne.s32.totalorder %s22, %s23
    %p34 = scmp.eq.s32.totalorder %s14, 0
    %p35 = por %p33, %p34
    %p36 = scmp.ne.s32.totalorder %s22, %s23
    %p37 = scmp.eq.s32.totalorder %s15, 1
    %p38 = por %p36, %p37
    %p40 = scmp.ne.s32.totalorder %s23, %s39
    %p41 = scmp.eq.s32.totalorder %s15, 0
    %p42 = por %p40, %p41
    %s44 = sadd.s32 %s43, 1
    %p47 = scmp.eq.s32.totalorder %s9, 1
    %p48 = scmp.ne.s32.totalorder %s43, %s45
    %p49 = scmp.eq.s32.totalorder %s9, 0
    %p50 = por %p48, %p49
    %p51 = scmp.ne.s32.totalorder %s43, %s45
    %p52 = scmp.eq.s32.totalorder %s14, 1
    %p53 = por %p51, %p52
    %p54 = scmp.ne.s32.totalorder %s45, %s46
    %p55 = scmp.eq.s32.totalorder %s14, 0
    %p56 = por %p54, %p55
    %p57 = scmp.ne.s32.totalorder %s45, %s46
    %p58 = scmp.eq.s32.totalorder %s15, 1
    %p59 = por %p57, %p58
    %p61 = scmp.ne.s32.totalorder %s46, %s60
    %p62 = scmp.eq.s32.totalorder %s15, 0
    %p63 = por %p61, %p62
    %s65 = sadd.s32 %s64, 1
    %p68 = scmp.eq.s32.totalorder %s9, 1
    %p69 = scmp.ne.s32.totalorder %s64, %s66
    %p70 = scmp.eq.s32.totalorder %s9, 0
    %p71 = por %p69, %p70
    %p72 = scmp.ne.s32.totalorder %s64, %s66
    %p73 = scmp.eq.s32.totalorder %s14, 1
    %p74 = por %p72, %p73
    %p75 = scmp.ne.s32.totalorder %s66, %s67
    %p76 = scmp.eq.s32.totalorder %s14, 0
    %p77 = por %p75, %p76
    %p78 = scmp.ne.s32.totalorder %s66, %s67
    %p79 = scmp.eq.s32.totalorder %s15, 1
    %p80 = por %p78, %p79
    %p82 = scmp.ne.s32.totalorder %s67, %s81
    %p83 = scmp.eq.s32.totalorder %s15, 0
    %p84 = por %p82, %p83
    %s85 = ssub.s32 %s9, %s16
    %p86 = scmp.eq.s32.totalorder %s85, 0
    %s88 = sadd.s32 %s87, 1
    %s89 = scalar_select %p86, %s87, %s88
    %p92 = pneg %p86
    %p93 = scmp.eq.s32.totalorder %s9, 1
    %p94 = por %p92, %p93
    %p95 = scmp.ne.s32.totalorder %s87, %s90
    %p96 = scmp.eq.s32.totalorder %s9, 0
    %p97 = por %p95, %p96
    %p98 = scmp.ne.s32.totalorder %s87, %s90
    %p99 = scmp.eq.s32.totalorder %s14, 1
    %p100 = por %p98, %p99
    %p101 = scmp.ne.s32.totalorder %s90, %s91
    %p102 = scmp.eq.s32.totalorder %s14, 0
    %p103 = por %p101, %p102
    %p104 = scmp.ne.s32.totalorder %s90, %s91
    %p105 = scmp.eq.s32.totalorder %s15, 1
    %p106 = por %p104, %p105
    %p108 = scmp.ne.s32.totalorder %s91, %s107
    %p109 = scmp.eq.s32.totalorder %s15, 0
    %p110 = por %p108, %p109
    %p111 = scmp.le.s32.totalorder 1, %s9
    %p112 = scmp.lt.s32.totalorder %s9, 3
    %p113 = pnand %p111, %p112
    %p114 = pneg %p113
    // Predicated region
    $region9: #{discriminator_forward_packed.1} parent=5 // pred_check
      _
    $region10: #{discriminator_forward_packed.1} parent=5 // pred_check_branch
      %116 = sbr.rel (%p113) target = $region12
    $region11: #{discriminator_forward_packed.1} parent=5 // pred_region
      %s117 = ssub.s32 %s9, 1
      // Predicated region
      $region13: #{discriminator_forward_packed.1} parent=11 // pred_check
        %p118 = pneg %p56
      $region14: #{discriminator_forward_packed.1} parent=11 // pred_check_branch
        %120 = sbr.rel (%p118) target = $region16
      $region15: #{discriminator_forward_packed.1} parent=11 // pred_region
        _
      $region16: #{discriminator_forward_packed.1} parent=11 // pred_fallthru
        _
      // Predicated region
      $region17: #{discriminator_forward_packed.1} parent=11 // pred_check
        %p121 = pneg %p77
      $region18: #{discriminator_forward_packed.1} parent=11 // pred_check_branch
        %123 = sbr.rel (%p121) target = $region20
      $region19: #{discriminator_forward_packed.1} parent=11 // pred_region
        _
      $region20: #{discriminator_forward_packed.1} parent=11 // pred_fallthru
        _
    $region12: #{discriminator_forward_packed.1} parent=5 // pred_fallthru
      _
    %p124 = scmp.lt.s32.totalorder %s9, 2
    // Predicated region
    $region21: #{discriminator_forward_packed.1} parent=5 // pred_check
      %p125 = pneg %p124
    $region22: #{discriminator_forward_packed.1} parent=5 // pred_check_branch
      %127 = sbr.rel (%p125) target = $region24
    $region23: #{discriminator_forward_packed.1} parent=5 // pred_region
      // Predicated region
      $region25: #{discriminator_forward_packed.1} parent=23 // pred_check
        %p128 = pneg %p29
      $region26: #{discriminator_forward_packed.1} parent=23 // pred_check_branch
        %130 = sbr.rel (%p128) target = $region28
      $region27: #{discriminator_forward_packed.1} parent=23 // pred_region
        %s131 = smul.u32 32, %s9
        %p132 = scmp.lt.s32.totalorder %s131, 63
        %s133 = scalar_select %p132, %s131, 63
        %s134 = smul.addr %s133, 8
        %s135 = scalar_lea.vmem %s0, %s134
        %s136 = smul.u32 32, %s9
      $region28: #{discriminator_forward_packed.1} parent=23 // pred_fallthru
        _
    $region24: #{discriminator_forward_packed.1} parent=5 // pred_fallthru
      _
    %p137 = scmp.le.s32.totalorder 1, %s9
    %p138 = scmp.lt.s32.totalorder %s9, 3
    %p139 = pnand %p137, %p138
    %p140 = pneg %p139
    // Predicated region
    $region29: #{discriminator_forward_packed.1} parent=5 // pred_check
      _
    $region30: #{discriminator_forward_packed.1} parent=5 // pred_check_branch
      %142 = sbr.rel (%p139) target = $region32
    $region31: #{discriminator_forward_packed.1} parent=5 // pred_region
      %s143 = ssub.s32 %s9, 1
      %s144 = smul.u32 32, %s14
      %p145 = scmp.lt.s32.totalorder %s144, 63
      %s146 = scalar_select %p145, %s144, 63
      %s147 = smul.addr %s146, 8
      %s148 = scalar_lea.vmem %s0, %s147
      %p149 = pneg %p35
      %p150 = pneg %p32
      %p151 = pneg %p56
      %p152 = pneg %p53
      %p153 = pneg %p77
      %p154 = pneg %p74
      %p155 = pneg %p103
      %p156 = pneg %p100
      %s157 = smul.u32 32, %s14
      %p158 = scmp.lt.s32.totalorder %s157, 63
      %s159 = scalar_select %p158, %s157, 63
      %s160 = smul.addr %s159, 8
      %s161 = scalar_lea.vmem %s3, %s160
      %s162 = smul.u32 32, %s14
      %p163 = scmp.lt.s32.totalorder %s162, 63
      %s164 = scalar_select %p163, %s162, 63
      %s165 = smul.addr %s164, 8
      %s166 = scalar_lea.vmem %s0, %s165
      %s167 = smul.u32 32, %s14
      %s168 = smul.u32 32, %s14
      %p169 = scmp.lt.s32.totalorder %s168, 63
      %s170 = scalar_select %p169, %s168, 63
      %s171 = smul.addr %s170, 8
      %s172 = scalar_lea.vmem %s3, %s171
      %s173 = smul.u32 32, %s14
      %v175 = vld [vmem:[%s166] sm:$0xff]
      %v176 = vld [vmem:[%s166 + $0x8] sm:$0xff]
      %v177 = vld [vmem:[%s166 + $0x10] sm:$0xff]
      %v178 = vld [vmem:[%s166 + $0x18] sm:$0xff]
      %v179 = vld [vmem:[%s166 + $0x20] sm:$0xff]
      %v180 = vld [vmem:[%s166 + $0x28] sm:$0xff]
      %v181 = vld [vmem:[%s166 + $0x30] sm:$0xff]
      %v182 = vld [vmem:[%s166 + $0x38] sm:$0xff]
      %v183 = vld [vmem:[%s166 + $0x40] sm:$0xff]
      %v184 = vld [vmem:[%s166 + $0x48] sm:$0xff]
      %v185 = vld [vmem:[%s166 + $0x50] sm:$0xff]
      %v186 = vld [vmem:[%s166 + $0x58] sm:$0xff]
      %v187 = vld [vmem:[%s166 + $0x60] sm:$0xff]
      %v188 = vld [vmem:[%s166 + $0x68] sm:$0xff]
      %v189 = vld [vmem:[%s166 + $0x70] sm:$0xff]
      %v190 = vld [vmem:[%s166 + $0x78] sm:$0xff]
      %v191 = vld [vmem:[%s166 + $0x80] sm:$0xff]
      %v192 = vld [vmem:[%s166 + $0x88] sm:$0xff]
      %v193 = vld [vmem:[%s166 + $0x90] sm:$0xff]
      %v194 = vld [vmem:[%s166 + $0x98] sm:$0xff]
      %v195 = vld [vmem:[%s166 + $0xa0] sm:$0xff]
      %v196 = vld [vmem:[%s166 + $0xa8] sm:$0xff]
      %v197 = vld [vmem:[%s166 + $0xb0] sm:$0xff]
      %v198 = vld [vmem:[%s166 + $0xb8] sm:$0xff]
      %v199 = vld [vmem:[%s166 + $0xc0] sm:$0xff]
      %v200 = vld [vmem:[%s166 + $0xc8] sm:$0xff]
      %v201 = vld [vmem:[%s166 + $0xd0] sm:$0xff]
      %v202 = vld [vmem:[%s166 + $0xd8] sm:$0xff]
      %v203 = vld [vmem:[%s166 + $0xe0] sm:$0xff]
      %v204 = vld [vmem:[%s166 + $0xe8] sm:$0xff]
      %v205 = vld [vmem:[%s166 + $0xf0] sm:$0xff]
      %v206 = vld [vmem:[%s166 + $0xf8] sm:$0xff]
      %v207 = vld [vmem:[%s1] sm:$0xf]
      %v208 = vld [vmem:[%s1 + $0x4] sm:$0xf]
      %v209 = vld [vmem:[%s1 + $0x8] sm:$0xf]
      %v210 = vld [vmem:[%s1 + $0xc] sm:$0xf]
      %v211 = vld [vmem:[%s2] sm:$0x1]
      %v212 = vpack.c.bf16 %v176, %v175
      %v213 = vpack.c.bf16 %v178, %v177
      %v214 = vpack.c.bf16 %v180, %v179
      %v215 = vpack.c.bf16 %v182, %v181
      %v216 = vpack.c.bf16 %v184, %v183
      %v217 = vpack.c.bf16 %v186, %v185
      %v218 = vpack.c.bf16 %v188, %v187
      %v219 = vpack.c.bf16 %v190, %v189
      %v220 = vpack.c.bf16 %v192, %v191
      %v221 = vpack.c.bf16 %v194, %v193
      %v222 = vpack.c.bf16 %v196, %v195
      %v223 = vpack.c.bf16 %v198, %v197
      %v224 = vpack.c.bf16 %v200, %v199
      %v225 = vpack.c.bf16 %v202, %v201
      %v226 = vpack.c.bf16 %v204, %v203
      %v227 = vpack.c.bf16 %v206, %v205
      %v229 = vlaneseq
      %v230 = vshrl.u32 %v229, 7
      %v231 = vsub.s32 0, %v230
      %v232 = vrot.slane %v211, %v231
      %v238 = vunpack.c.l.b16 %v207
      %v239 = vunpack.c.l.b16 %v208
      %v240 = vunpack.c.l.b16 %v209
      %v241 = vunpack.c.l.b16 %v210
      %v242 = vpack.c.b16 %v239, %v238
      %v243 = vpack.c.b16 %v241, %v240
      %vm246 = vcmask 261120
      %v248 = vsel %vm246, %v212, 0
      %v251 = vsel %vm246, %v213, 0
      %v254 = vsel %vm246, %v214, 0
      %v257 = vsel %vm246, %v215, 0
      %v260 = vsel %vm246, %v216, 0
      %v263 = vsel %vm246, %v217, 0
      %v266 = vsel %vm246, %v218, 0
      %v269 = vsel %vm246, %v219, 0
      %v272 = vsel %vm246, %v220, 0
      %v275 = vsel %vm246, %v221, 0
      %v278 = vsel %vm246, %v222, 0
      %v281 = vsel %vm246, %v223, 0
      %v284 = vsel %vm246, %v224, 0
      %v287 = vsel %vm246, %v225, 0
      %v290 = vsel %vm246, %v226, 0
      %v293 = vsel %vm246, %v227, 0
      %295 = vmatprep.subr.bf16.mxu0 0
      %296 = vmatpush1.bf16.msra.mxu0 %v242
      %297 = vmatprep.subr.bf16.mxu0 0
      %298 = vmatpush1.bf16.msra.mxu0 %v243
      %299 = vmatprep.subr.bf16.mxu0 0
      %300 = vmatpush1.bf16.msra.mxu0 0
      %301 = vmatprep.subr.bf16.mxu0 0
      %302 = vmatpush1.bf16.msra.mxu0 0
      %303 = vmatprep.subr.bf16.mxu0 0
      %304 = vmatpush1.bf16.msra.mxu0 0
      %305 = vmatprep.subr.bf16.mxu0 0
      %306 = vmatpush1.bf16.msra.mxu0 0
      %307 = vmatprep.subr.bf16.mxu0 0
      %308 = vmatpush1.bf16.msra.mxu0 0
      %309 = vmatprep.subr.bf16.mxu0 0
      %310 = vmatpush1.bf16.msra.mxu0 0
      %311 = vmatprep.subr.bf16.mxu0 0
      %312 = vmatpush1.bf16.msra.mxu0 0
      %313 = vmatprep.subr.bf16.mxu0 0
      %314 = vmatpush1.bf16.msra.mxu0 0
      %315 = vmatprep.subr.bf16.mxu0 0
      %316 = vmatpush1.bf16.msra.mxu0 0
      %317 = vmatprep.subr.bf16.mxu0 0
      %318 = vmatpush1.bf16.msra.mxu0 0
      %319 = vmatprep.subr.bf16.mxu0 0
      %320 = vmatpush1.bf16.msra.mxu0 0
      %321 = vmatprep.subr.bf16.mxu0 0
      %322 = vmatpush1.bf16.msra.mxu0 0
      %323 = vmatprep.subr.bf16.mxu0 0
      %324 = vmatpush1.bf16.msra.mxu0 0
      %325 = vmatprep.subr.bf16.mxu0 0
      %326 = vmatpush1.bf16.msra.mxu0 0
      %327 = vmatprep.mubr.bf16.mxu0 0
      %328 = vmatmul.mubr.bf16.gmra.mrb[0].mxu0 %v248
      %v329 = vpop.f32.mrb[0].mxu0
      %v330 = vadd.f32 %v232, %v329
      %v331 = vpop.f32.mrb[0].mxu0
      %v332 = vpop.f32.mrb[0].mxu0
      %v333 = vadd.f32 %v232, %v332
      %v334 = vpop.f32.mrb[0].mxu0
      %335 = vmatprep.mubr.bf16.mxu0 0
      %336 = vmatmul.mubr.bf16.gmra.mrb[0].mxu0 %v251
      %v337 = vpop.f32.mrb[0].mxu0
      %v338 = vadd.f32 %v232, %v337
      %v339 = vpop.f32.mrb[0].mxu0
      %v340 = vpop.f32.mrb[0].mxu0
      %v341 = vadd.f32 %v232, %v340
      %v342 = vpop.f32.mrb[0].mxu0
      %343 = vmatprep.mubr.bf16.mxu0 0
      %344 = vmatmul.mubr.bf16.gmra.mrb[0].mxu0 %v254
      %v345 = vpop.f32.mrb[0].mxu0
      %v346 = vadd.f32 %v232, %v345
      %v347 = vpop.f32.mrb[0].mxu0
      %v348 = vpop.f32.mrb[0].mxu0
      %v349 = vadd.f32 %v232, %v348
      %v350 = vpop.f32.mrb[0].mxu0
      %351 = vmatprep.mubr.bf16.mxu0 0
      %352 = vmatmul.mubr.bf16.gmra.mrb[0].mxu0 %v257
      %v353 = vpop.f32.mrb[0].mxu0
      %v354 = vadd.f32 %v232, %v353
      %v355 = vpop.f32.mrb[0].mxu0
      %v356 = vpop.f32.mrb[0].mxu0
      %v357 = vadd.f32 %v232, %v356
      %v358 = vpop.f32.mrb[0].mxu0
      %359 = vmatprep.mubr.bf16.mxu0 0
      %360 = vmatmul.mubr.bf16.gmra.mrb[0].mxu0 %v260
      %v361 = vpop.f32.mrb[0].mxu0
      %v362 = vadd.f32 %v232, %v361
      %v363 = vpop.f32.mrb[0].mxu0
      %v364 = vpop.f32.mrb[0].mxu0
      %v365 = vadd.f32 %v232, %v364
      %v366 = vpop.f32.mrb[0].mxu0
      %367 = vmatprep.mubr.bf16.mxu0 0
      %368 = vmatmul.mubr.bf16.gmra.mrb[0].mxu0 %v263
      %v369 = vpop.f32.mrb[0].mxu0
      %v370 = vadd.f32 %v232, %v369
      %v371 = vpop.f32.mrb[0].mxu0
      %v372 = vpop.f32.mrb[0].mxu0
      %v373 = vadd.f32 %v232, %v372
      %v374 = vpop.f32.mrb[0].mxu0
      %375 = vmatprep.mubr.bf16.mxu0 0
      %376 = vmatmul.mubr.bf16.gmra.mrb[0].mxu0 %v266
      %v377 = vpop.f32.mrb[0].mxu0
      %v378 = vadd.f32 %v232, %v377
      %v379 = vpop.f32.mrb[0].mxu0
      %v380 = vpop.f32.mrb[0].mxu0
      %v381 = vadd.f32 %v232, %v380
      %v382 = vpop.f32.mrb[0].mxu0
      %383 = vmatprep.mubr.bf16.mxu0 0
      %384 = vmatmul.mubr.bf16.gmra.mrb[0].mxu0 %v269
      %v385 = vpop.f32.mrb[0].mxu0
      %v386 = vadd.f32 %v232, %v385
      %v387 = vpop.f32.mrb[0].mxu0
      %v388 = vpop.f32.mrb[0].mxu0
      %v389 = vadd.f32 %v232, %v388
      %v390 = vpop.f32.mrb[0].mxu0
      %391 = vmatprep.mubr.bf16.mxu0 0
      %392 = vmatmul.mubr.bf16.gmra.mrb[0].mxu0 %v272
      %v393 = vpop.f32.mrb[0].mxu0
      %v394 = vadd.f32 %v232, %v393
      %v395 = vpop.f32.mrb[0].mxu0
      %v396 = vpop.f32.mrb[0].mxu0
      %v397 = vadd.f32 %v232, %v396
      %v398 = vpop.f32.mrb[0].mxu0
      %399 = vmatprep.mubr.bf16.mxu0 0
      %400 = vmatmul.mubr.bf16.gmra.mrb[0].mxu0 %v275
      %v401 = vpop.f32.mrb[0].mxu0
      %v402 = vadd.f32 %v232, %v401
      %v403 = vpop.f32.mrb[0].mxu0
      %v404 = vpop.f32.mrb[0].mxu0
      %v405 = vadd.f32 %v232, %v404
      %v406 = vpop.f32.mrb[0].mxu0
      %407 = vmatprep.mubr.bf16.mxu0 0
      %408 = vmatmul.mubr.bf16.gmra.mrb[0].mxu0 %v278
      %v409 = vpop.f32.mrb[0].mxu0
      %v410 = vadd.f32 %v232, %v409
      %v411 = vpop.f32.mrb[0].mxu0
      %v412 = vpop.f32.mrb[0].mxu0
      %v413 = vadd.f32 %v232, %v412
      %v414 = vpop.f32.mrb[0].mxu0
      %415 = vmatprep.mubr.bf16.mxu0 0
      %416 = vmatmul.mubr.bf16.gmra.mrb[0].mxu0 %v281
      %v417 = vpop.f32.mrb[0].mxu0
      %v418 = vadd.f32 %v232, %v417
      %v419 = vpop.f32.mrb[0].mxu0
      %v420 = vpop.f32.mrb[0].mxu0
      %v421 = vadd.f32 %v232, %v420
      %v422 = vpop.f32.mrb[0].mxu0
      %423 = vmatprep.mubr.bf16.mxu0 0
      %424 = vmatmul.mubr.bf16.gmra.mrb[0].mxu0 %v284
      %v425 = vpop.f32.mrb[0].mxu0
      %v426 = vadd.f32 %v232, %v425
      %v427 = vpop.f32.mrb[0].mxu0
      %v428 = vpop.f32.mrb[0].mxu0
      %v429 = vadd.f32 %v232, %v428
      %v430 = vpop.f32.mrb[0].mxu0
      %431 = vmatprep.mubr.bf16.mxu0 0
      %432 = vmatmul.mubr.bf16.gmra.mrb[0].mxu0 %v287
      %v433 = vpop.f32.mrb[0].mxu0
      %v434 = vadd.f32 %v232, %v433
      %v435 = vpop.f32.mrb[0].mxu0
      %v436 = vpop.f32.mrb[0].mxu0
      %v437 = vadd.f32 %v232, %v436
      %v438 = vpop.f32.mrb[0].mxu0
      %439 = vmatprep.mubr.bf16.mxu0 0
      %440 = vmatmul.mubr.bf16.gmra.mrb[0].mxu0 %v290
      %v441 = vpop.f32.mrb[0].mxu0
      %v442 = vadd.f32 %v232, %v441
      %v443 = vpop.f32.mrb[0].mxu0
      %v444 = vpop.f32.mrb[0].mxu0
      %v445 = vadd.f32 %v232, %v444
      %v446 = vpop.f32.mrb[0].mxu0
      %447 = vmatprep.mubr.bf16.mxu0 0
      %448 = vmatmul.mubr.bf16.gmra.mrb[0].mxu0 %v293
      %v449 = vpop.f32.mrb[0].mxu0
      %v450 = vadd.f32 %v232, %v449
      %v451 = vpop.f32.mrb[0].mxu0
      %v452 = vpop.f32.mrb[0].mxu0
      %v453 = vadd.f32 %v232, %v452
      %v454 = vpop.f32.mrb[0].mxu0
      %455 = vdwg.mxu0
      %v456 = vmax.f32 %v330, 0.0
      %v457 = vmax.f32 %v333, 0.0
      %v458 = vmax.f32 %v338, 0.0
      %v459 = vmax.f32 %v341, 0.0
      %v460 = vmax.f32 %v346, 0.0
      %v461 = vmax.f32 %v349, 0.0
      %v462 = vmax.f32 %v354, 0.0
      %v463 = vmax.f32 %v357, 0.0
      %v464 = vmax.f32 %v362, 0.0
      %v465 = vmax.f32 %v365, 0.0
      %v466 = vmax.f32 %v370, 0.0
      %v467 = vmax.f32 %v373, 0.0
      %v468 = vmax.f32 %v378, 0.0
      %v469 = vmax.f32 %v381, 0.0
      %v470 = vmax.f32 %v386, 0.0
      %v471 = vmax.f32 %v389, 0.0
      %v472 = vmax.f32 %v394, 0.0
      %v473 = vmax.f32 %v397, 0.0
      %v474 = vmax.f32 %v402, 0.0
      %v475 = vmax.f32 %v405, 0.0
      %v476 = vmax.f32 %v410, 0.0
      %v477 = vmax.f32 %v413, 0.0
      %v478 = vmax.f32 %v418, 0.0
      %v479 = vmax.f32 %v421, 0.0
      %v480 = vmax.f32 %v426, 0.0
      %v481 = vmax.f32 %v429, 0.0
      %v482 = vmax.f32 %v434, 0.0
      %v483 = vmax.f32 %v437, 0.0
      %v484 = vmax.f32 %v442, 0.0
      %v485 = vmax.f32 %v445, 0.0
      %v486 = vmax.f32 %v450, 0.0
      %v487 = vmax.f32 %v453, 0.0
      %s488 = scalar_lea.vmem %s1, 64
      %v489 = vld [vmem:[%s488] sm:$0xf]
      %v490 = vld [vmem:[%s488 + $0x4] sm:$0xf]
      %v491 = vld [vmem:[%s488 + $0x8] sm:$0xf]
      %v492 = vld [vmem:[%s488 + $0xc] sm:$0xf]
      %v493 = vld [vmem:[%s488 + $0x10] sm:$0xf]
      %v494 = vld [vmem:[%s488 + $0x14] sm:$0xf]
      %v495 = vld [vmem:[%s488 + $0x18] sm:$0xf]
      %v496 = vld [vmem:[%s488 + $0x1c] sm:$0xf]
      %v497 = vld [vmem:[%s488 + $0x20] sm:$0xf]
      %v498 = vld [vmem:[%s488 + $0x24] sm:$0xf]
      %v499 = vld [vmem:[%s488 + $0x28] sm:$0xf]
      %v500 = vld [vmem:[%s488 + $0x2c] sm:$0xf]
      %v501 = vld [vmem:[%s488 + $0x30] sm:$0xf]
      %v502 = vld [vmem:[%s488 + $0x34] sm:$0xf]
      %v503 = vld [vmem:[%s488 + $0x38] sm:$0xf]
      %v504 = vld [vmem:[%s488 + $0x3c] sm:$0xf]
      %s505 = scalar_lea.vmem %s2, 1
      %v506 = vld [vmem:[%s505] sm:$0x1]
      %v507 = vpack.c.bf16 %v457, %v456
      %v508 = vpack.c.bf16 %v459, %v458
      %v509 = vpack.c.bf16 %v461, %v460
      %v510 = vpack.c.bf16 %v463, %v462
      %v511 = vpack.c.bf16 %v465, %v464
      %v512 = vpack.c.bf16 %v467, %v466
      %v513 = vpack.c.bf16 %v469, %v468
      %v514 = vpack.c.bf16 %v471, %v470
      %v515 = vpack.c.bf16 %v473, %v472
      %v516 = vpack.c.bf16 %v475, %v474
      %v517 = vpack.c.bf16 %v477, %v476
      %v518 = vpack.c.bf16 %v479, %v478
      %v519 = vpack.c.bf16 %v481, %v480
      %v520 = vpack.c.bf16 %v483, %v482
      %v521 = vpack.c.bf16 %v485, %v484
      %v522 = vpack.c.bf16 %v487, %v486
      %v524 = vlaneseq
      %v525 = vshrl.u32 %v524, 7
      %v526 = vsub.s32 0, %v525
      %v527 = vrot.slane %v506, %v526
      %v545 = vunpack.c.l.b16 %v489
      %v546 = vunpack.c.l.b16 %v490
      %v547 = vunpack.c.l.b16 %v491
      %v548 = vunpack.c.l.b16 %v492
      %v549 = vunpack.c.l.b16 %v493
      %v550 = vunpack.c.l.b16 %v494
      %v551 = vunpack.c.l.b16 %v495
      %v552 = vunpack.c.l.b16 %v496
      %v553 = vunpack.c.l.b16 %v497
      %v554 = vunpack.c.l.b16 %v498
      %v555 = vunpack.c.l.b16 %v499
      %v556 = vunpack.c.l.b16 %v500
      %v557 = vunpack.c.l.b16 %v501
      %v558 = vunpack.c.l.b16 %v502
      %v559 = vunpack.c.l.b16 %v503
      %v560 = vunpack.c.l.b16 %v504
      %v561 = vpack.c.b16 %v546, %v545
      %v562 = vpack.c.b16 %v548, %v547
      %v563 = vpack.c.b16 %v550, %v549
      %v564 = vpack.c.b16 %v552, %v551
      %v565 = vpack.c.b16 %v554, %v553
      %v566 = vpack.c.b16 %v556, %v555
      %v567 = vpack.c.b16 %v558, %v557
      %v568 = vpack.c.b16 %v560, %v559
      %577 = vmatprep.subr.bf16.mxu0 0
      %578 = vmatpush1.bf16.msra.mxu0 %v561
      %579 = vmatprep.subr.bf16.mxu0 0
      %580 = vmatpush1.bf16.msra.mxu0 %v562
      %581 = vmatprep.subr.bf16.mxu0 0
      %582 = vmatpush1.bf16.msra.mxu0 %v563
      %583 = vmatprep.subr.bf16.mxu0 0
      %584 = vmatpush1.bf16.msra.mxu0 %v564
      %585 = vmatprep.subr.bf16.mxu0 0
      %586 = vmatpush1.bf16.msra.mxu0 %v565
      %587 = vmatprep.subr.bf16.mxu0 0
      %588 = vmatpush1.bf16.msra.mxu0 %v566
      %589 = vmatprep.subr.bf16.mxu0 0
      %590 = vmatpush1.bf16.msra.mxu0 %v567
      %591 = vmatprep.subr.bf16.mxu0 0
      %592 = vmatpush1.bf16.msra.mxu0 %v568
      %593 = vmatprep.subr.bf16.mxu0 0
      %594 = vmatpush1.bf16.msra.mxu0 0
      %595 = vmatprep.subr.bf16.mxu0 0
      %596 = vmatpush1.bf16.msra.mxu0 0
      %597 = vmatprep.subr.bf16.mxu0 0
      %598 = vmatpush1.bf16.msra.mxu0 0
      %599 = vmatprep.subr.bf16.mxu0 0
      %600 = vmatpush1.bf16.msra.mxu0 0
      %601 = vmatprep.subr.bf16.mxu0 0
      %602 = vmatpush1.bf16.msra.mxu0 0
      %603 = vmatprep.subr.bf16.mxu0 0
      %604 = vmatpush1.bf16.msra.mxu0 0
      %605 = vmatprep.subr.bf16.mxu0 0
      %606 = vmatpush1.bf16.msra.mxu0 0
      %607 = vmatprep.subr.bf16.mxu0 0
      %608 = vmatpush1.bf16.msra.mxu0 0
      %609 = vmatprep.mubr.bf16.mxu0 0
      %610 = vmatmul.mubr.bf16.gmra.mrb[0].mxu0 %v507
      %v611 = vpop.f32.mrb[0].mxu0
      %v612 = vadd.f32 %v527, %v611
      %v613 = vpop.f32.mrb[0].mxu0
      %v614 = vpop.f32.mrb[0].mxu0
      %v615 = vadd.f32 %v527, %v614
      %v616 = vpop.f32.mrb[0].mxu0
      %617 = vmatprep.mubr.bf16.mxu0 0
      %618 = vmatmul.mubr.bf16.gmra.mrb[0].mxu0 %v508
      %v619 = vpop.f32.mrb[0].mxu0
      %v620 = vadd.f32 %v527, %v619
      %v621 = vpop.f32.mrb[0].mxu0
      %v622 = vpop.f32.mrb[0].mxu0
      %v623 = vadd.f32 %v527, %v622
      %v624 = vpop.f32.mrb[0].mxu0
      %625 = vmatprep.mubr.bf16.mxu0 0
      %626 = vmatmul.mubr.bf16.gmra.mrb[0].mxu0 %v509
      %v627 = vpop.f32.mrb[0].mxu0
      %v628 = vadd.f32 %v527, %v627
      %v629 = vpop.f32.mrb[0].mxu0
      %v630 = vpop.f32.mrb[0].mxu0
      %v631 = vadd.f32 %v527, %v630
      %v632 = vpop.f32.mrb[0].mxu0
      %633 = vmatprep.mubr.bf16.mxu0 0
      %634 = vmatmul.mubr.bf16.gmra.mrb[0].mxu0 %v510
      %v635 = vpop.f32.mrb[0].mxu0
      %v636 = vadd.f32 %v527, %v635
      %v637 = vpop.f32.mrb[0].mxu0
      %v638 = vpop.f32.mrb[0].mxu0
      %v639 = vadd.f32 %v527, %v638
      %v640 = vpop.f32.mrb[0].mxu0
      %641 = vmatprep.mubr.bf16.mxu0 0
      %642 = vmatmul.mubr.bf16.gmra.mrb[0].mxu0 %v511
      %v643 = vpop.f32.mrb[0].mxu0
      %v644 = vadd.f32 %v527, %v643
      %v645 = vpop.f32.mrb[0].mxu0
      %v646 = vpop.f32.mrb[0].mxu0
      %v647 = vadd.f32 %v527, %v646
      %v648 = vpop.f32.mrb[0].mxu0
      %649 = vmatprep.mubr.bf16.mxu0 0
      %650 = vmatmul.mubr.bf16.gmra.mrb[0].mxu0 %v512
      %v651 = vpop.f32.mrb[0].mxu0
      %v652 = vadd.f32 %v527, %v651
      %v653 = vpop.f32.mrb[0].mxu0
      %v654 = vpop.f32.mrb[0].mxu0
      %v655 = vadd.f32 %v527, %v654
      %v656 = vpop.f32.mrb[0].mxu0
      %657 = vmatprep.mubr.bf16.mxu0 0
      %658 = vmatmul.mubr.bf16.gmra.mrb[0].mxu0 %v513
      %v659 = vpop.f32.mrb[0].mxu0
      %v660 = vadd.f32 %v527, %v659
      %v661 = vpop.f32.mrb[0].mxu0
      %v662 = vpop.f32.mrb[0].mxu0
      %v663 = vadd.f32 %v527, %v662
      %v664 = vpop.f32.mrb[0].mxu0
      %665 = vmatprep.mubr.bf16.mxu0 0
      %666 = vmatmul.mubr.bf16.gmra.mrb[0].mxu0 %v514
      %v667 = vpop.f32.mrb[0].mxu0
      %v668 = vadd.f32 %v527, %v667
      %v669 = vpop.f32.mrb[0].mxu0
      %v670 = vpop.f32.mrb[0].mxu0
      %v671 = vadd.f32 %v527, %v670
      %v672 = vpop.f32.mrb[0].mxu0
      %673 = vmatprep.mubr.bf16.mxu0 0
      %674 = vmatmul.mubr.bf16.gmra.mrb[0].mxu0 %v515
      %v675 = vpop.f32.mrb[0].mxu0
      %v676 = vadd.f32 %v527, %v675
      %v677 = vpop.f32.mrb[0].mxu0
      %v678 = vpop.f32.mrb[0].mxu0
      %v679 = vadd.f32 %v527, %v678
      %v680 = vpop.f32.mrb[0].mxu0
      %681 = vmatprep.mubr.bf16.mxu0 0
      %682 = vmatmul.mubr.bf16.gmra.mrb[0].mxu0 %v516
      %v683 = vpop.f32.mrb[0].mxu0
      %v684 = vadd.f32 %v527, %v683
      %v685 = vpop.f32.mrb[0].mxu0
      %v686 = vpop.f32.mrb[0].mxu0
      %v687 = vadd.f32 %v527, %v686
      %v688 = vpop.f32.mrb[0].mxu0
      %689 = vmatprep.mubr.bf16.mxu0 0
      %690 = vmatmul.mubr.bf16.gmra.mrb[0].mxu0 %v517
      %v691 = vpop.f32.mrb[0].mxu0
      %v692 = vadd.f32 %v527, %v691
      %v693 = vpop.f32.mrb[0].mxu0
      %v694 = vpop.f32.mrb[0].mxu0
      %v695 = vadd.f32 %v527, %v694
      %v696 = vpop.f32.mrb[0].mxu0
      %697 = vmatprep.mubr.bf16.mxu0 0
      %698 = vmatmul.mubr.bf16.gmra.mrb[0].mxu0 %v518
      %v699 = vpop.f32.mrb[0].mxu0
      %v700 = vadd.f32 %v527, %v699
      %v701 = vpop.f32.mrb[0].mxu0
      %v702 = vpop.f32.mrb[0].mxu0
      %v703 = vadd.f32 %v527, %v702
      %v704 = vpop.f32.mrb[0].mxu0
      %705 = vmatprep.mubr.bf16.mxu0 0
      %706 = vmatmul.mubr.bf16.gmra.mrb[0].mxu0 %v519
      %v707 = vpop.f32.mrb[0].mxu0
      %v708 = vadd.f32 %v527, %v707
      %v709 = vpop.f32.mrb[0].mxu0
      %v710 = vpop.f32.mrb[0].mxu0
      %v711 = vadd.f32 %v527, %v710
      %v712 = vpop.f32.mrb[0].mxu0
      %713 = vmatprep.mubr.bf16.mxu0 0
      %714 = vmatmul.mubr.bf16.gmra.mrb[0].mxu0 %v520
      %v715 = vpop.f32.mrb[0].mxu0
      %v716 = vadd.f32 %v527, %v715
      %v717 = vpop.f32.mrb[0].mxu0
      %v718 = vpop.f32.mrb[0].mxu0
      %v719 = vadd.f32 %v527, %v718
      %v720 = vpop.f32.mrb[0].mxu0
      %721 = vmatprep.mubr.bf16.mxu0 0
      %722 = vmatmul.mubr.bf16.gmra.mrb[0].mxu0 %v521
      %v723 = vpop.f32.mrb[0].mxu0
      %v724 = vadd.f32 %v527, %v723
      %v725 = vpop.f32.mrb[0].mxu0
      %v726 = vpop.f32.mrb[0].mxu0
      %v727 = vadd.f32 %v527, %v726
      %v728 = vpop.f32.mrb[0].mxu0
      %729 = vmatprep.mubr.bf16.mxu0 0
      %730 = vmatmul.mubr.bf16.gmra.mrb[0].mxu0 %v522
      %v731 = vpop.f32.mrb[0].mxu0
      %v732 = vadd.f32 %v527, %v731
      %v733 = vpop.f32.mrb[0].mxu0
      %v734 = vpop.f32.mrb[0].mxu0
      %v735 = vadd.f32 %v527, %v734
      %v736 = vpop.f32.mrb[0].mxu0
      %737 = vdwg.mxu0
      %v738 = vmax.f32 %v612, 0.0
      %v739 = vmax.f32 %v615, 0.0
      %v740 = vmax.f32 %v620, 0.0
      %v741 = vmax.f32 %v623, 0.0
      %v742 = vmax.f32 %v628, 0.0
      %v743 = vmax.f32 %v631, 0.0
      %v744 = vmax.f32 %v636, 0.0
      %v745 = vmax.f32 %v639, 0.0
      %v746 = vmax.f32 %v644, 0.0
      %v747 = vmax.f32 %v647, 0.0
      %v748 = vmax.f32 %v652, 0.0
      %v749 = vmax.f32 %v655, 0.0
      %v750 = vmax.f32 %v660, 0.0
      %v751 = vmax.f32 %v663, 0.0
      %v752 = vmax.f32 %v668, 0.0
      %v753 = vmax.f32 %v671, 0.0
      %v754 = vmax.f32 %v676, 0.0
      %v755 = vmax.f32 %v679, 0.0
      %v756 = vmax.f32 %v684, 0.0
      %v757 = vmax.f32 %v687, 0.0
      %v758 = vmax.f32 %v692, 0.0
      %v759 = vmax.f32 %v695, 0.0
      %v760 = vmax.f32 %v700, 0.0
      %v761 = vmax.f32 %v703, 0.0
      %v762 = vmax.f32 %v708, 0.0
      %v763 = vmax.f32 %v711, 0.0
      %v764 = vmax.f32 %v716, 0.0
      %v765 = vmax.f32 %v719, 0.0
      %v766 = vmax.f32 %v724, 0.0
      %v767 = vmax.f32 %v727, 0.0
      %v768 = vmax.f32 %v732, 0.0
      %v769 = vmax.f32 %v735, 0.0
      %s770 = scalar_lea.vmem %s1, 128
      %v771 = vld [vmem:[%s770] sm:$0xf]
      %v772 = vld [vmem:[%s770 + $0x4] sm:$0xf]
      %v773 = vld [vmem:[%s770 + $0x8] sm:$0xf]
      %v774 = vld [vmem:[%s770 + $0xc] sm:$0xf]
      %v775 = vld [vmem:[%s770 + $0x10] sm:$0xf]
      %v776 = vld [vmem:[%s770 + $0x14] sm:$0xf]
      %v777 = vld [vmem:[%s770 + $0x18] sm:$0xf]
      %v778 = vld [vmem:[%s770 + $0x1c] sm:$0xf]
      %v779 = vld [vmem:[%s770 + $0x20] sm:$0xf]
      %v780 = vld [vmem:[%s770 + $0x24] sm:$0xf]
      %v781 = vld [vmem:[%s770 + $0x28] sm:$0xf]
      %v782 = vld [vmem:[%s770 + $0x2c] sm:$0xf]
      %v783 = vld [vmem:[%s770 + $0x30] sm:$0xf]
      %v784 = vld [vmem:[%s770 + $0x34] sm:$0xf]
      %v785 = vld [vmem:[%s770 + $0x38] sm:$0xf]
      %v786 = vld [vmem:[%s770 + $0x3c] sm:$0xf]
      %s787 = scalar_lea.vmem %s2, 2
      %v788 = vld [vmem:[%s787] sm:$0x1]
      %v789 = vpack.c.bf16 %v739, %v738
      %v790 = vpack.c.bf16 %v741, %v740
      %v791 = vpack.c.bf16 %v743, %v742
      %v792 = vpack.c.bf16 %v745, %v744
      %v793 = vpack.c.bf16 %v747, %v746
      %v794 = vpack.c.bf16 %v749, %v748
      %v795 = vpack.c.bf16 %v751, %v750
      %v796 = vpack.c.bf16 %v753, %v752
      %v797 = vpack.c.bf16 %v755, %v754
      %v798 = vpack.c.bf16 %v757, %v756
      %v799 = vpack.c.bf16 %v759, %v758
      %v800 = vpack.c.bf16 %v761, %v760
      %v801 = vpack.c.bf16 %v763, %v762
      %v802 = vpack.c.bf16 %v765, %v764
      %v803 = vpack.c.bf16 %v767, %v766
      %v804 = vpack.c.bf16 %v769, %v768
      %v806 = vlaneseq
      %v807 = vshrl.u32 %v806, 7
      %v808 = vsub.s32 0, %v807
      %v809 = vrot.slane %v788, %v808
      %v827 = vunpack.c.l.b16 %v771
      %v828 = vunpack.c.l.b16 %v772
      %v829 = vunpack.c.l.b16 %v773
      %v830 = vunpack.c.l.b16 %v774
      %v831 = vunpack.c.l.b16 %v775
      %v832 = vunpack.c.l.b16 %v776
      %v833 = vunpack.c.l.b16 %v777
      %v834 = vunpack.c.l.b16 %v778
      %v835 = vunpack.c.l.b16 %v779
      %v836 = vunpack.c.l.b16 %v780
      %v837 = vunpack.c.l.b16 %v781
      %v838 = vunpack.c.l.b16 %v782
      %v839 = vunpack.c.l.b16 %v783
      %v840 = vunpack.c.l.b16 %v784
      %v841 = vunpack.c.l.b16 %v785
      %v842 = vunpack.c.l.b16 %v786
      %v843 = vpack.c.b16 %v828, %v827
      %v844 = vpack.c.b16 %v830, %v829
      %v845 = vpack.c.b16 %v832, %v831
      %v846 = vpack.c.b16 %v834, %v833
      %v847 = vpack.c.b16 %v836, %v835
      %v848 = vpack.c.b16 %v838, %v837
      %v849 = vpack.c.b16 %v840, %v839
      %v850 = vpack.c.b16 %v842, %v841
      %859 = vmatprep.subr.bf16.mxu0 0
      %860 = vmatpush1.bf16.msra.mxu0 %v843
      %861 = vmatprep.subr.bf16.mxu0 0
      %862 = vmatpush1.bf16.msra.mxu0 %v844
      %863 = vmatprep.subr.bf16.mxu0 0
      %864 = vmatpush1.bf16.msra.mxu0 %v845
      %865 = vmatprep.subr.bf16.mxu0 0
      %866 = vmatpush1.bf16.msra.mxu0 %v846
      %867 = vmatprep.subr.bf16.mxu0 0
      %868 = vmatpush1.bf16.msra.mxu0 %v847
      %869 = vmatprep.subr.bf16.mxu0 0
      %870 = vmatpush1.bf16.msra.mxu0 %v848
      %871 = vmatprep.subr.bf16.mxu0 0
      %872 = vmatpush1.bf16.msra.mxu0 %v849
      %873 = vmatprep.subr.bf16.mxu0 0
      %874 = vmatpush1.bf16.msra.mxu0 %v850
      %875 = vmatprep.subr.bf16.mxu0 0
      %876 = vmatpush1.bf16.msra.mxu0 0
      %877 = vmatprep.subr.bf16.mxu0 0
      %878 = vmatpush1.bf16.msra.mxu0 0
      %879 = vmatprep.subr.bf16.mxu0 0
      %880 = vmatpush1.bf16.msra.mxu0 0
      %881 = vmatprep.subr.bf16.mxu0 0
      %882 = vmatpush1.bf16.msra.mxu0 0
      %883 = vmatprep.subr.bf16.mxu0 0
      %884 = vmatpush1.bf16.msra.mxu0 0
      %885 = vmatprep.subr.bf16.mxu0 0
      %886 = vmatpush1.bf16.msra.mxu0 0
      %887 = vmatprep.subr.bf16.mxu0 0
      %888 = vmatpush1.bf16.msra.mxu0 0
      %889 = vmatprep.subr.bf16.mxu0 0
      %890 = vmatpush1.bf16.msra.mxu0 0
      %891 = vmatprep.mubr.bf16.mxu0 0
      %892 = vmatmul.mubr.bf16.gmra.mrb[0].mxu0 %v789
      %v893 = vpop.f32.mrb[0].mxu0
      %v894 = vadd.f32 %v809, %v893
      %v895 = vpop.f32.mrb[0].mxu0
      %v896 = vpop.f32.mrb[0].mxu0
      %v897 = vadd.f32 %v809, %v896
      %v898 = vpop.f32.mrb[0].mxu0
      %899 = vmatprep.mubr.bf16.mxu0 0
      %900 = vmatmul.mubr.bf16.gmra.mrb[0].mxu0 %v790
      %v901 = vpop.f32.mrb[0].mxu0
      %v902 = vadd.f32 %v809, %v901
      %v903 = vpop.f32.mrb[0].mxu0
      %v904 = vpop.f32.mrb[0].mxu0
      %v905 = vadd.f32 %v809, %v904
      %v906 = vpop.f32.mrb[0].mxu0
      %907 = vmatprep.mubr.bf16.mxu0 0
      %908 = vmatmul.mubr.bf16.gmra.mrb[0].mxu0 %v791
      %v909 = vpop.f32.mrb[0].mxu0
      %v910 = vadd.f32 %v809, %v909
      %v911 = vpop.f32.mrb[0].mxu0
      %v912 = vpop.f32.mrb[0].mxu0
      %v913 = vadd.f32 %v809, %v912
      %v914 = vpop.f32.mrb[0].mxu0
      %915 = vmatprep.mubr.bf16.mxu0 0
      %916 = vmatmul.mubr.bf16.gmra.mrb[0].mxu0 %v792
      %v917 = vpop.f32.mrb[0].mxu0
      %v918 = vadd.f32 %v809, %v917
      %v919 = vpop.f32.mrb[0].mxu0
      %v920 = vpop.f32.mrb[0].mxu0
      %v921 = vadd.f32 %v809, %v920
      %v922 = vpop.f32.mrb[0].mxu0
      %923 = vmatprep.mubr.bf16.mxu0 0
      %924 = vmatmul.mubr.bf16.gmra.mrb[0].mxu0 %v793
      %v925 = vpop.f32.mrb[0].mxu0
      %v926 = vadd.f32 %v809, %v925
      %v927 = vpop.f32.mrb[0].mxu0
      %v928 = vpop.f32.mrb[0].mxu0
      %v929 = vadd.f32 %v809, %v928
      %v930 = vpop.f32.mrb[0].mxu0
      %931 = vmatprep.mubr.bf16.mxu0 0
      %932 = vmatmul.mubr.bf16.gmra.mrb[0].mxu0 %v794
      %v933 = vpop.f32.mrb[0].mxu0
      %v934 = vadd.f32 %v809, %v933
      %v935 = vpop.f32.mrb[0].mxu0
      %v936 = vpop.f32.mrb[0].mxu0
      %v937 = vadd.f32 %v809, %v936
      %v938 = vpop.f32.mrb[0].mxu0
      %939 = vmatprep.mubr.bf16.mxu0 0
      %940 = vmatmul.mubr.bf16.gmra.mrb[0].mxu0 %v795
      %v941 = vpop.f32.mrb[0].mxu0
      %v942 = vadd.f32 %v809, %v941
      %v943 = vpop.f32.mrb[0].mxu0
      %v944 = vpop.f32.mrb[0].mxu0
      %v945 = vadd.f32 %v809, %v944
      %v946 = vpop.f32.mrb[0].mxu0
      %947 = vmatprep.mubr.bf16.mxu0 0
      %948 = vmatmul.mubr.bf16.gmra.mrb[0].mxu0 %v796
      %v949 = vpop.f32.mrb[0].mxu0
      %v950 = vadd.f32 %v809, %v949
      %v951 = vpop.f32.mrb[0].mxu0
      %v952 = vpop.f32.mrb[0].mxu0
      %v953 = vadd.f32 %v809, %v952
      %v954 = vpop.f32.mrb[0].mxu0
      %955 = vmatprep.mubr.bf16.mxu0 0
      %956 = vmatmul.mubr.bf16.gmra.mrb[0].mxu0 %v797
      %v957 = vpop.f32.mrb[0].mxu0
      %v958 = vadd.f32 %v809, %v957
      %v959 = vpop.f32.mrb[0].mxu0
      %v960 = vpop.f32.mrb[0].mxu0
      %v961 = vadd.f32 %v809, %v960
      %v962 = vpop.f32.mrb[0].mxu0
      %963 = vmatprep.mubr.bf16.mxu0 0
      %964 = vmatmul.mubr.bf16.gmra.mrb[0].mxu0 %v798
      %v965 = vpop.f32.mrb[0].mxu0
      %v966 = vadd.f32 %v809, %v965
      %v967 = vpop.f32.mrb[0].mxu0
      %v968 = vpop.f32.mrb[0].mxu0
      %v969 = vadd.f32 %v809, %v968
      %v970 = vpop.f32.mrb[0].mxu0
      %971 = vmatprep.mubr.bf16.mxu0 0
      %972 = vmatmul.mubr.bf16.gmra.mrb[0].mxu0 %v799
      %v973 = vpop.f32.mrb[0].mxu0
      %v974 = vadd.f32 %v809, %v973
      %v975 = vpop.f32.mrb[0].mxu0
      %v976 = vpop.f32.mrb[0].mxu0
      %v977 = vadd.f32 %v809, %v976
      %v978 = vpop.f32.mrb[0].mxu0
      %979 = vmatprep.mubr.bf16.mxu0 0
      %980 = vmatmul.mubr.bf16.gmra.mrb[0].mxu0 %v800
      %v981 = vpop.f32.mrb[0].mxu0
      %v982 = vadd.f32 %v809, %v981
      %v983 = vpop.f32.mrb[0].mxu0
      %v984 = vpop.f32.mrb[0].mxu0
      %v985 = vadd.f32 %v809, %v984
      %v986 = vpop.f32.mrb[0].mxu0
      %987 = vmatprep.mubr.bf16.mxu0 0
      %988 = vmatmul.mubr.bf16.gmra.mrb[0].mxu0 %v801
      %v989 = vpop.f32.mrb[0].mxu0
      %v990 = vadd.f32 %v809, %v989
      %v991 = vpop.f32.mrb[0].mxu0
      %v992 = vpop.f32.mrb[0].mxu0
      %v993 = vadd.f32 %v809, %v992
      %v994 = vpop.f32.mrb[0].mxu0
      %995 = vmatprep.mubr.bf16.mxu0 0
      %996 = vmatmul.mubr.bf16.gmra.mrb[0].mxu0 %v802
      %v997 = vpop.f32.mrb[0].mxu0
      %v998 = vadd.f32 %v809, %v997
      %v999 = vpop.f32.mrb[0].mxu0
      %v1000 = vpop.f32.mrb[0].mxu0
      %v1001 = vadd.f32 %v809, %v1000
      %v1002 = vpop.f32.mrb[0].mxu0
      %1003 = vmatprep.mubr.bf16.mxu0 0
      %1004 = vmatmul.mubr.bf16.gmra.mrb[0].mxu0 %v803
      %v1005 = vpop.f32.mrb[0].mxu0
      %v1006 = vadd.f32 %v809, %v1005
      %v1007 = vpop.f32.mrb[0].mxu0
      %v1008 = vpop.f32.mrb[0].mxu0
      %v1009 = vadd.f32 %v809, %v1008
      %v1010 = vpop.f32.mrb[0].mxu0
      %1011 = vmatprep.mubr.bf16.mxu0 0
      %1012 = vmatmul.mubr.bf16.gmra.mrb[0].mxu0 %v804
      %v1013 = vpop.f32.mrb[0].mxu0
      %v1014 = vadd.f32 %v809, %v1013
      %v1015 = vpop.f32.mrb[0].mxu0
      %v1016 = vpop.f32.mrb[0].mxu0
      %v1017 = vadd.f32 %v809, %v1016
      %v1018 = vpop.f32.mrb[0].mxu0
      %1019 = vdwg.mxu0
      %v1020 = vlaneseq
      %v1021 = vand.u32 %v1020, 127
      %vm1022 = vcmp.lt.s32.totalorder %v1021, 8
      %v1023 = vsel %vm1022, %v894, -1e+30
      %v1024 = vsel %vm1022, %v897, -1e+30
      %v1025 = vsel %vm1022, %v902, -1e+30
      %v1026 = vsel %vm1022, %v905, -1e+30
      %v1027 = vsel %vm1022, %v910, -1e+30
      %v1028 = vsel %vm1022, %v913, -1e+30
      %v1029 = vsel %vm1022, %v918, -1e+30
      %v1030 = vsel %vm1022, %v921, -1e+30
      %v1031 = vsel %vm1022, %v926, -1e+30
      %v1032 = vsel %vm1022, %v929, -1e+30
      %v1033 = vsel %vm1022, %v934, -1e+30
      %v1034 = vsel %vm1022, %v937, -1e+30
      %v1035 = vsel %vm1022, %v942, -1e+30
      %v1036 = vsel %vm1022, %v945, -1e+30
      %v1037 = vsel %vm1022, %v950, -1e+30
      %v1038 = vsel %vm1022, %v953, -1e+30
      %v1039 = vsel %vm1022, %v958, -1e+30
      %v1040 = vsel %vm1022, %v961, -1e+30
      %v1041 = vsel %vm1022, %v966, -1e+30
      %v1042 = vsel %vm1022, %v969, -1e+30
      %v1043 = vsel %vm1022, %v974, -1e+30
      %v1044 = vsel %vm1022, %v977, -1e+30
      %v1045 = vsel %vm1022, %v982, -1e+30
      %v1046 = vsel %vm1022, %v985, -1e+30
      %v1047 = vsel %vm1022, %v990, -1e+30
      %v1048 = vsel %vm1022, %v993, -1e+30
      %v1049 = vsel %vm1022, %v998, -1e+30
      %v1050 = vsel %vm1022, %v1001, -1e+30
      %v1051 = vsel %vm1022, %v1006, -1e+30
      %v1052 = vsel %vm1022, %v1009, -1e+30
      %v1053 = vsel %vm1022, %v1014, -1e+30
      %v1054 = vsel %vm1022, %v1017, -1e+30
      %1055 = vmax.xlane.f32.xlu0 %v1023
      %v1056 = vpop.xlane.xlu0 %1055
      %1057 = vmax.xlane.f32.xlu0 %v1024
      %v1058 = vpop.xlane.xlu0 %1057
      %1059 = vmax.xlane.f32.xlu0 %v1025
      %v1060 = vpop.xlane.xlu0 %1059
      %1061 = vmax.xlane.f32.xlu0 %v1026
      %v1062 = vpop.xlane.xlu0 %1061
      %1063 = vmax.xlane.f32.xlu0 %v1027
      %v1064 = vpop.xlane.xlu0 %1063
      %1065 = vmax.xlane.f32.xlu0 %v1028
      %v1066 = vpop.xlane.xlu0 %1065
      %1067 = vmax.xlane.f32.xlu0 %v1029
      %v1068 = vpop.xlane.xlu0 %1067
      %1069 = vmax.xlane.f32.xlu0 %v1030
      %v1070 = vpop.xlane.xlu0 %1069
      %1071 = vmax.xlane.f32.xlu0 %v1031
      %v1072 = vpop.xlane.xlu0 %1071
      %1073 = vmax.xlane.f32.xlu0 %v1032
      %v1074 = vpop.xlane.xlu0 %1073
      %1075 = vmax.xlane.f32.xlu0 %v1033
      %v1076 = vpop.xlane.xlu0 %1075
      %1077 = vmax.xlane.f32.xlu0 %v1034
      %v1078 = vpop.xlane.xlu0 %1077
      %1079 = vmax.xlane.f32.xlu0 %v1035
      %v1080 = vpop.xlane.xlu0 %1079
      %1081 = vmax.xlane.f32.xlu0 %v1036
      %v1082 = vpop.xlane.xlu0 %1081
      %1083 = vmax.xlane.f32.xlu0 %v1037
      %v1084 = vpop.xlane.xlu0 %1083
      %1085 = vmax.xlane.f32.xlu0 %v1038
      %v1086 = vpop.xlane.xlu0 %1085
      %1087 = vmax.xlane.f32.xlu0 %v1039
      %v1088 = vpop.xlane.xlu0 %1087
      %1089 = vmax.xlane.f32.xlu0 %v1040
      %v1090 = vpop.xlane.xlu0 %1089
      %1091 = vmax.xlane.f32.xlu0 %v1041
      %v1092 = vpop.xlane.xlu0 %1091
      %1093 = vmax.xlane.f32.xlu0 %v1042
      %v1094 = vpop.xlane.xlu0 %1093
      %1095 = vmax.xlane.f32.xlu0 %v1043
      %v1096 = vpop.xlane.xlu0 %1095
      %1097 = vmax.xlane.f32.xlu0 %v1044
      %v1098 = vpop.xlane.xlu0 %1097
      %1099 = vmax.xlane.f32.xlu0 %v1045
      %v1100 = vpop.xlane.xlu0 %1099
      %1101 = vmax.xlane.f32.xlu0 %v1046
      %v1102 = vpop.xlane.xlu0 %1101
      %1103 = vmax.xlane.f32.xlu0 %v1047
      %v1104 = vpop.xlane.xlu0 %1103
      %1105 = vmax.xlane.f32.xlu0 %v1048
      %v1106 = vpop.xlane.xlu0 %1105
      %1107 = vmax.xlane.f32.xlu0 %v1049
      %v1108 = vpop.xlane.xlu0 %1107
      %1109 = vmax.xlane.f32.xlu0 %v1050
      %v1110 = vpop.xlane.xlu0 %1109
      %1111 = vmax.xlane.f32.xlu0 %v1051
      %v1112 = vpop.xlane.xlu0 %1111
      %1113 = vmax.xlane.f32.xlu0 %v1052
      %v1114 = vpop.xlane.xlu0 %1113
      %1115 = vmax.xlane.f32.xlu0 %v1053
      %v1116 = vpop.xlane.xlu0 %1115
      %1117 = vmax.xlane.f32.xlu0 %v1054
      %v1118 = vpop.xlane.xlu0 %1117
      %v1119 = vsub.f32 %v1023, %v1056
      %v1120 = vsub.f32 %v1024, %v1058
      %v1121 = vsub.f32 %v1025, %v1060
      %v1122 = vsub.f32 %v1026, %v1062
      %v1123 = vsub.f32 %v1027, %v1064
      %v1124 = vsub.f32 %v1028, %v1066
      %v1125 = vsub.f32 %v1029, %v1068
      %v1126 = vsub.f32 %v1030, %v1070
      %v1127 = vsub.f32 %v1031, %v1072
      %v1128 = vsub.f32 %v1032, %v1074
      %v1129 = vsub.f32 %v1033, %v1076
      %v1130 = vsub.f32 %v1034, %v1078
      %v1131 = vsub.f32 %v1035, %v1080
      %v1132 = vsub.f32 %v1036, %v1082
      %v1133 = vsub.f32 %v1037, %v1084
      %v1134 = vsub.f32 %v1038, %v1086
      %v1135 = vsub.f32 %v1039, %v1088
      %v1136 = vsub.f32 %v1040, %v1090
      %v1137 = vsub.f32 %v1041, %v1092
      %v1138 = vsub.f32 %v1042, %v1094
      %v1139 = vsub.f32 %v1043, %v1096
      %v1140 = vsub.f32 %v1044, %v1098
      %v1141 = vsub.f32 %v1045, %v1100
      %v1142 = vsub.f32 %v1046, %v1102
      %v1143 = vsub.f32 %v1047, %v1104
      %v1144 = vsub.f32 %v1048, %v1106
      %v1145 = vsub.f32 %v1049, %v1108
      %v1146 = vsub.f32 %v1050, %v1110
      %v1147 = vsub.f32 %v1051, %v1112
      %v1148 = vsub.f32 %v1052, %v1114
      %v1149 = vsub.f32 %v1053, %v1116
      %v1150 = vsub.f32 %v1054, %v1118
      %v1151 = vmul.f32 %v1119, 1.442695
      %v1152 = vpow.pop %v1151
      %v1153 = vmul.f32 %v1120, 1.442695
      %v1154 = vpow.pop %v1153
      %v1155 = vmul.f32 %v1121, 1.442695
      %v1156 = vpow.pop %v1155
      %v1157 = vmul.f32 %v1122, 1.442695
      %v1158 = vpow.pop %v1157
      %v1159 = vmul.f32 %v1123, 1.442695
      %v1160 = vpow.pop %v1159
      %v1161 = vmul.f32 %v1124, 1.442695
      %v1162 = vpow.pop %v1161
      %v1163 = vmul.f32 %v1125, 1.442695
      %v1164 = vpow.pop %v1163
      %v1165 = vmul.f32 %v1126, 1.442695
      %v1166 = vpow.pop %v1165
      %v1167 = vmul.f32 %v1127, 1.442695
      %v1168 = vpow.pop %v1167
      %v1169 = vmul.f32 %v1128, 1.442695
      %v1170 = vpow.pop %v1169
      %v1171 = vmul.f32 %v1129, 1.442695
      %v1172 = vpow.pop %v1171
      %v1173 = vmul.f32 %v1130, 1.442695
      %v1174 = vpow.pop %v1173
      %v1175 = vmul.f32 %v1131, 1.442695
      %v1176 = vpow.pop %v1175
      %v1177 = vmul.f32 %v1132, 1.442695
      %v1178 = vpow.pop %v1177
      %v1179 = vmul.f32 %v1133, 1.442695
      %v1180 = vpow.pop %v1179
      %v1181 = vmul.f32 %v1134, 1.442695
      %v1182 = vpow.pop %v1181
      %v1183 = vmul.f32 %v1135, 1.442695
      %v1184 = vpow.pop %v1183
      %v1185 = vmul.f32 %v1136, 1.442695
      %v1186 = vpow.pop %v1185
      %v1187 = vmul.f32 %v1137, 1.442695
      %v1188 = vpow.pop %v1187
      %v1189 = vmul.f32 %v1138, 1.442695
      %v1190 = vpow.pop %v1189
      %v1191 = vmul.f32 %v1139, 1.442695
      %v1192 = vpow.pop %v1191
      %v1193 = vmul.f32 %v1140, 1.442695
      %v1194 = vpow.pop %v1193
      %v1195 = vmul.f32 %v1141, 1.442695
      %v1196 = vpow.pop %v1195
      %v1197 = vmul.f32 %v1142, 1.442695
      %v1198 = vpow.pop %v1197
      %v1199 = vmul.f32 %v1143, 1.442695
      %v1200 = vpow.pop %v1199
      %v1201 = vmul.f32 %v1144, 1.442695
      %v1202 = vpow.pop %v1201
      %v1203 = vmul.f32 %v1145, 1.442695
      %v1204 = vpow.pop %v1203
      %v1205 = vmul.f32 %v1146, 1.442695
      %v1206 = vpow.pop %v1205
      %v1207 = vmul.f32 %v1147, 1.442695
      %v1208 = vpow.pop %v1207
      %v1209 = vmul.f32 %v1148, 1.442695
      %v1210 = vpow.pop %v1209
      %v1211 = vmul.f32 %v1149, 1.442695
      %v1212 = vpow.pop %v1211
      %v1213 = vmul.f32 %v1150, 1.442695
      %v1214 = vpow.pop %v1213
      %1215 = vadd.xlane.f32.xlu0 %v1152
      %v1216 = vpop.xlane.xlu0 %1215
      %1217 = vadd.xlane.f32.xlu0 %v1154
      %v1218 = vpop.xlane.xlu0 %1217
      %1219 = vadd.xlane.f32.xlu0 %v1156
      %v1220 = vpop.xlane.xlu0 %1219
      %1221 = vadd.xlane.f32.xlu0 %v1158
      %v1222 = vpop.xlane.xlu0 %1221
      %1223 = vadd.xlane.f32.xlu0 %v1160
      %v1224 = vpop.xlane.xlu0 %1223
      %1225 = vadd.xlane.f32.xlu0 %v1162
      %v1226 = vpop.xlane.xlu0 %1225
      %1227 = vadd.xlane.f32.xlu0 %v1164
      %v1228 = vpop.xlane.xlu0 %1227
      %1229 = vadd.xlane.f32.xlu0 %v1166
      %v1230 = vpop.xlane.xlu0 %1229
      %1231 = vadd.xlane.f32.xlu0 %v1168
      %v1232 = vpop.xlane.xlu0 %1231
      %1233 = vadd.xlane.f32.xlu0 %v1170
      %v1234 = vpop.xlane.xlu0 %1233
      %1235 = vadd.xlane.f32.xlu0 %v1172
      %v1236 = vpop.xlane.xlu0 %1235
      %1237 = vadd.xlane.f32.xlu0 %v1174
      %v1238 = vpop.xlane.xlu0 %1237
      %1239 = vadd.xlane.f32.xlu0 %v1176
      %v1240 = vpop.xlane.xlu0 %1239
      %1241 = vadd.xlane.f32.xlu0 %v1178
      %v1242 = vpop.xlane.xlu0 %1241
      %1243 = vadd.xlane.f32.xlu0 %v1180
      %v1244 = vpop.xlane.xlu0 %1243
      %1245 = vadd.xlane.f32.xlu0 %v1182
      %v1246 = vpop.xlane.xlu0 %1245
      %1247 = vadd.xlane.f32.xlu0 %v1184
      %v1248 = vpop.xlane.xlu0 %1247
      %1249 = vadd.xlane.f32.xlu0 %v1186
      %v1250 = vpop.xlane.xlu0 %1249
      %1251 = vadd.xlane.f32.xlu0 %v1188
      %v1252 = vpop.xlane.xlu0 %1251
      %1253 = vadd.xlane.f32.xlu0 %v1190
      %v1254 = vpop.xlane.xlu0 %1253
      %1255 = vadd.xlane.f32.xlu0 %v1192
      %v1256 = vpop.xlane.xlu0 %1255
      %1257 = vadd.xlane.f32.xlu0 %v1194
      %v1258 = vpop.xlane.xlu0 %1257
      %1259 = vadd.xlane.f32.xlu0 %v1196
      %v1260 = vpop.xlane.xlu0 %1259
      %1261 = vadd.xlane.f32.xlu0 %v1198
      %v1262 = vpop.xlane.xlu0 %1261
      %1263 = vadd.xlane.f32.xlu0 %v1200
      %v1264 = vpop.xlane.xlu0 %1263
      %1265 = vadd.xlane.f32.xlu0 %v1202
      %v1266 = vpop.xlane.xlu0 %1265
      %1267 = vadd.xlane.f32.xlu0 %v1204
      %v1268 = vpop.xlane.xlu0 %1267
      %1269 = vadd.xlane.f32.xlu0 %v1206
      %v1270 = vpop.xlane.xlu0 %1269
      %1271 = vadd.xlane.f32.xlu0 %v1208
      %v1272 = vpop.xlane.xlu0 %1271
      %1273 = vadd.xlane.f32.xlu0 %v1210
      %v1274 = vpop.xlane.xlu0 %1273
      %1275 = vadd.xlane.f32.xlu0 %v1212
      %v1276 = vpop.xlane.xlu0 %1275
      %1277 = vadd.xlane.f32.xlu0 %v1214
      %v1278 = vpop.xlane.xlu0 %1277
      %v1279 = vrcp.pop %v1216
      %v1280 = vmul.f32 %v1152, %v1279
      %v1281 = vrcp.pop %v1218
      %v1282 = vmul.f32 %v1154, %v1281
      %v1283 = vrcp.pop %v1220
      %v1284 = vmul.f32 %v1156, %v1283
      %v1285 = vrcp.pop %v1222
      %v1286 = vmul.f32 %v1158, %v1285
      %v1287 = vrcp.pop %v1224
      %v1288 = vmul.f32 %v1160, %v1287
      %v1289 = vrcp.pop %v1226
      %v1290 = vmul.f32 %v1162, %v1289
      %v1291 = vrcp.pop %v1228
      %v1292 = vmul.f32 %v1164, %v1291
      %v1293 = vrcp.pop %v1230
      %v1294 = vmul.f32 %v1166, %v1293
      %v1295 = vrcp.pop %v1232
      %v1296 = vmul.f32 %v1168, %v1295
      %v1297 = vrcp.pop %v1234
      %v1298 = vmul.f32 %v1170, %v1297
      %v1299 = vrcp.pop %v1236
      %v1300 = vmul.f32 %v1172, %v1299
      %v1301 = vrcp.pop %v1238
      %v1302 = vmul.f32 %v1174, %v1301
      %v1303 = vrcp.pop %v1240
      %v1304 = vmul.f32 %v1176, %v1303
      %v1305 = vrcp.pop %v1242
      %v1306 = vmul.f32 %v1178, %v1305
      %v1307 = vrcp.pop %v1244
      %v1308 = vmul.f32 %v1180, %v1307
      %v1309 = vrcp.pop %v1246
      %v1310 = vmul.f32 %v1182, %v1309
      %v1311 = vrcp.pop %v1248
      %v1312 = vmul.f32 %v1184, %v1311
      %v1313 = vrcp.pop %v1250
      %v1314 = vmul.f32 %v1186, %v1313
      %v1315 = vrcp.pop %v1252
      %v1316 = vmul.f32 %v1188, %v1315
      %v1317 = vrcp.pop %v1254
      %v1318 = vmul.f32 %v1190, %v1317
      %v1319 = vrcp.pop %v1256
      %v1320 = vmul.f32 %v1192, %v1319
      %v1321 = vrcp.pop %v1258
      %v1322 = vmul.f32 %v1194, %v1321
      %v1323 = vrcp.pop %v1260
      %v1324 = vmul.f32 %v1196, %v1323
      %v1325 = vrcp.pop %v1262
      %v1326 = vmul.f32 %v1198, %v1325
      %v1327 = vrcp.pop %v1264
      %v1328 = vmul.f32 %v1200, %v1327
      %v1329 = vrcp.pop %v1266
      %v1330 = vmul.f32 %v1202, %v1329
      %v1331 = vrcp.pop %v1268
      %v1332 = vmul.f32 %v1204, %v1331
      %v1333 = vrcp.pop %v1270
      %v1334 = vmul.f32 %v1206, %v1333
      %v1335 = vrcp.pop %v1272
      %v1336 = vmul.f32 %v1208, %v1335
      %v1337 = vrcp.pop %v1274
      %v1338 = vmul.f32 %v1210, %v1337
      %v1339 = vrcp.pop %v1276
      %v1340 = vmul.f32 %v1212, %v1339
      %v1341 = vrcp.pop %v1278
      %v1342 = vmul.f32 %v1214, %v1341
      %1343 = vst [vmem:[%s172] sm:$0xff] %v1280
      %1344 = vst [vmem:[%s172 + $0x8] sm:$0xff] %v1282
      %1345 = vst [vmem:[%s172 + $0x10] sm:$0xff] %v1284
      %1346 = vst [vmem:[%s172 + $0x18] sm:$0xff] %v1286
      %1347 = vst [vmem:[%s172 + $0x20] sm:$0xff] %v1288
      %1348 = vst [vmem:[%s172 + $0x28] sm:$0xff] %v1290
      %1349 = vst [vmem:[%s172 + $0x30] sm:$0xff] %v1292
      %1350 = vst [vmem:[%s172 + $0x38] sm:$0xff] %v1294
      %1351 = vst [vmem:[%s172 + $0x40] sm:$0xff] %v1296
      %1352 = vst [vmem:[%s172 + $0x48] sm:$0xff] %v1298
      %1353 = vst [vmem:[%s172 + $0x50] sm:$0xff] %v1300
      %1354 = vst [vmem:[%s172 + $0x58] sm:$0xff] %v1302
      %1355 = vst [vmem:[%s172 + $0x60] sm:$0xff] %v1304
      %1356 = vst [vmem:[%s172 + $0x68] sm:$0xff] %v1306
      %1357 = vst [vmem:[%s172 + $0x70] sm:$0xff] %v1308
      %1358 = vst [vmem:[%s172 + $0x78] sm:$0xff] %v1310
      %1359 = vst [vmem:[%s172 + $0x80] sm:$0xff] %v1312
      %1360 = vst [vmem:[%s172 + $0x88] sm:$0xff] %v1314
      %1361 = vst [vmem:[%s172 + $0x90] sm:$0xff] %v1316
      %1362 = vst [vmem:[%s172 + $0x98] sm:$0xff] %v1318
      %1363 = vst [vmem:[%s172 + $0xa0] sm:$0xff] %v1320
      %1364 = vst [vmem:[%s172 + $0xa8] sm:$0xff] %v1322
      %1365 = vst [vmem:[%s172 + $0xb0] sm:$0xff] %v1324
      %1366 = vst [vmem:[%s172 + $0xb8] sm:$0xff] %v1326
      %1367 = vst [vmem:[%s172 + $0xc0] sm:$0xff] %v1328
      %1368 = vst [vmem:[%s172 + $0xc8] sm:$0xff] %v1330
      %1369 = vst [vmem:[%s172 + $0xd0] sm:$0xff] %v1332
      %1370 = vst [vmem:[%s172 + $0xd8] sm:$0xff] %v1334
      %1371 = vst [vmem:[%s172 + $0xe0] sm:$0xff] %v1336
      %1372 = vst [vmem:[%s172 + $0xe8] sm:$0xff] %v1338
      %1373 = vst [vmem:[%s172 + $0xf0] sm:$0xff] %v1340
      %1374 = vst [vmem:[%s172 + $0xf8] sm:$0xff] %v1342
      %s1375 = smul.u32 32, %s14
      %p1376 = scmp.lt.s32.totalorder %s1375, 63
      %s1377 = scalar_select %p1376, %s1375, 63
      %s1378 = smul.addr %s1377, 8
      %s1379 = scalar_lea.vmem %s3, %s1378
      // Predicated region
      $region33: #{discriminator_forward_packed.1} parent=31 // pred_check
        %p1380 = pneg %p100
      $region34: #{discriminator_forward_packed.1} parent=31 // pred_check_branch
        %1382 = sbr.rel (%p1380) target = $region36
      $region35: #{discriminator_forward_packed.1} parent=31 // pred_region
        %s1383 = smul.u32 32, %s14
      $region36: #{discriminator_forward_packed.1} parent=31 // pred_fallthru
        _
    $region32: #{discriminator_forward_packed.1} parent=5 // pred_fallthru
      _
    %p1384 = scmp.le.s32.totalorder 2, %s9
    // Predicated region
    $region37: #{discriminator_forward_packed.1} parent=5 // pred_check
      %p1385 = pneg %p1384
    $region38: #{discriminator_forward_packed.1} parent=5 // pred_check_branch
      %1387 = sbr.rel (%p1385) target = $region40
    $region39: #{discriminator_forward_packed.1} parent=5 // pred_region
      %s1388 = ssub.s32 %s9, 2
      // Predicated region
      $region41: #{discriminator_forward_packed.1} parent=39 // pred_check
        %p1389 = pneg %p106
      $region42: #{discriminator_forward_packed.1} parent=39 // pred_check_branch
        %1391 = sbr.rel (%p1389) target = $region44
      $region43: #{discriminator_forward_packed.1} parent=39 // pred_region
        %s1392 = smul.u32 32, %s15
        %p1393 = scmp.lt.s32.totalorder %s1392, 63
        %s1394 = scalar_select %p1393, %s1392, 63
        %s1395 = smul.addr %s1394, 8
        %s1396 = scalar_lea.vmem %s3, %s1395
      $region44: #{discriminator_forward_packed.1} parent=39 // pred_fallthru
        _
    $region40: #{discriminator_forward_packed.1} parent=5 // pred_fallthru
      _
  $region6: #{discriminator_forward_packed.1} parent=0 // loop_footer
    %s13 = sadd.s32 1, %s9
  $region7: #{discriminator_forward_packed.1} parent=0 // loop_footer_branch
    %8 = sbr.rel target = $region3
  $region8: #{discriminator_forward_packed.1} parent=0 // loop_exit
    _

</llo_original>
